<compile_context>
chip_gen: v5e
topology: v5e:2x2
jax: 0.10.0
libtpu: 0.0.40
codegen_flags: <defaults>
</compile_context>

<pallas_src>
import functools

import jax
import jax.numpy as jnp
from jax.experimental import pallas as pl
from jax.experimental.pallas import tpu as pltpu

_VMEM_BUDGET = 40 * 1024 * 1024     # tile-selection budget (fits v7x 64 MiB)
_VMEM_LIMIT = 48 * 1024 * 1024      # scoped VMEM limit handed to Mosaic


def _contranorm_kernel(q_ref, k_ref, gamma_ref, beta_ref, o_ref,
                       qn_sc, m_sc, l_sc, acc_sc, *,
                       scale, inv_temp, eps, d_orig, n_orig,
                       d_padded, n_padded, use_fixed_max):
    kk = pl.program_id(2)
    nk = pl.num_programs(2)
    mxu_dtype = qn_sc.dtype

    # ---- once per (b, qi): hoisted q-side normalization + accumulator init ----
    @pl.when(kk == 0)
    def _():
        xq0 = q_ref[0].astype(jnp.float32)                      # (TQ, Dp)
        ssq = jnp.sum(xq0 * xq0, axis=-1, keepdims=True)
        qn = xq0 * jax.lax.rsqrt(jnp.maximum(ssq, 1e-24))       # == x / max(|x|, 1e-12)
        # fold 1/temp into the q operand so no (TQ, TK) rescale is needed
        qn_sc[...] = (qn * inv_temp).astype(mxu_dtype)
        l_sc[...] = jnp.zeros_like(l_sc)
        acc_sc[...] = jnp.zeros_like(acc_sc)
        if not use_fixed_max:
            m_sc[...] = jnp.full_like(m_sc, -jnp.inf)

    # ---- per key tile: normalize keys, scores, softmax accumulation ----
    xk = k_ref[0].astype(jnp.float32)                           # (TK, Dp)
    ssk = jnp.sum(xk * xk, axis=-1, keepdims=True)
    kn = (xk * jax.lax.rsqrt(jnp.maximum(ssk, 1e-24))).astype(mxu_dtype)

    # scores: contract feature dims directly (no XLU transpose of kn)
    s = jax.lax.dot_general(
        qn_sc[...], kn,
        dimension_numbers=(((1,), (1,)), ((), ())),
        preferred_element_type=jnp.float32,
    )                                                           # (TQ, TK)

    if n_padded:
        col = kk * s.shape[-1] + jax.lax.broadcasted_iota(jnp.int32, s.shape, 1)
        key_mask = col < n_orig

    v = k_ref[0].astype(mxu_dtype)                              # V = x key tile

    if use_fixed_max:
        # s <= 1/temp (cosine similarity) and the diagonal attains it exactly,
        # so a fixed shift of 1/temp is the true per-row max.
        e = jnp.exp(s - inv_temp)
        if n_padded:
            e = jnp.where(key_mask, e, 0.0)
        l_sc[...] += jnp.sum(e, axis=-1, keepdims=True)
        acc_sc[...] += jnp.dot(e.astype(mxu_dtype), v,
                               preferred_element_type=jnp.float32)
    else:
        m_prev = m_sc[...]
        m_new = jnp.maximum(m_prev, jnp.max(s, axis=-1, keepdims=True))
        alpha = jnp.exp(m_prev - m_new)
        e = jnp.exp(s - m_new)
        if n_padded:
            e = jnp.where(key_mask, e, 0.0)
        l_sc[...] = alpha * l_sc[...] + jnp.sum(e, axis=-1, keepdims=True)
        acc_sc[...] = alpha * acc_sc[...] + jnp.dot(
            e.astype(mxu_dtype), v, preferred_element_type=jnp.float32)
        m_sc[...] = m_new

    # ---- epilogue: deferred 1/l, ContraNorm update, LayerNorm, write true-D ----
    @pl.when(kk == nk - 1)
    def _():
        inv_l = pl.reciprocal(l_sc[...], approx=False)
        x_neg = acc_sc[...] * inv_l                             # (TQ, Dp)
        xq = q_ref[0].astype(jnp.float32)
        y = xq - scale * x_neg

        # LayerNorm over the true feature dim (biased variance, eps=1e-6).
        inv_d = 1.0 / d_orig
        mu = jnp.sum(y, axis=-1, keepdims=True) * inv_d
        if d_padded:
            lane = jax.lax.broadcasted_iota(jnp.int32, y.shape, 1)
            yc = jnp.where(lane < d_orig, y - mu, 0.0)
        else:
            yc = y - mu
        var = jnp.sum(yc * yc, axis=-1, keepdims=True) * inv_d
        yhat = yc * jax.lax.rsqrt(var + eps)
        if d_padded:
            yhat = yhat[:, :d_orig]                             # (TQ, D)
        out = (yhat * gamma_ref[...].astype(jnp.float32)
               + beta_ref[...].astype(jnp.float32))
        o_ref[0] = out.astype(o_ref.dtype)


def _round_up(v, m):
    return (v + m - 1) // m * m


def _preferred_tq_tk():
    """TQ=512 on v6e/v7x (push past the HBM ridge); 256 on v5-class chips."""
    tq, tk = 512, 256
    try:
        ver = str(getattr(pltpu.get_tpu_info(), "chip_version", "")).lower()
        if "v5" in ver or "5e" in ver or "5p" in ver:
            tq = 256
    except Exception:
        pass
    return tq, tk


def _vmem_estimate(tq, tk, dp, d_out, in_bytes, mxu_bytes):
    q_bufs = 2 * tq * dp * in_bytes           # double-buffered q tile
    k_bufs = 3 * tk * dp * in_bytes           # triple-buffered k/v tile
    o_bufs = 2 * tq * d_out * in_bytes        # double-buffered output tile
    qn_sc = tq * dp * mxu_bytes               # hoisted qn scratch
    acc_sc = 4 * tq * dp                      # f32 accumulator
    scores = 2 * 4 * tq * tk                  # f32 score staging headroom
    return q_bufs + k_bufs + o_bufs + qn_sc + acc_sc + scores


def contranorm(x, gamma, beta, *, scale=0.1, temp=1.0, eps=1e-6,
               tq=None, tk=None):
    """ContraNorm forward (default config). x: (B, N, D); gamma/beta: (D,)."""
    B, N, D = x.shape
    in_bytes = x.dtype.itemsize
    mxu_dtype = jnp.bfloat16 if x.dtype == jnp.bfloat16 else jnp.float32
    mxu_bytes = 2 if mxu_dtype == jnp.bfloat16 else 4

    # Lane-dense feature axis: pad D up to a multiple of 128 with zeros.
    Dp = max(_round_up(D, 128), 128)

    # --- tile selection: 128-multiples, N padded to the tile, VMEM-budgeted ---
    if tq is None or tk is None:
        ptq, ptk = _preferred_tq_tk()
        tq = ptq if tq is None else tq
        tk = ptk if tk is None else tk

    if N < 256:
        TQ = TK = _round_up(N, 8)
        Np = TQ
    else:
        TK = min(tk, 256)
        Np = _round_up(N, 256)
        TQ = 512 if (tq >= 512 and N >= 512 and Np % 512 == 0) else 256
        while TQ > 128 and _vmem_estimate(TQ, TK, Dp, D, in_bytes, mxu_bytes) > _VMEM_BUDGET:
            TQ //= 2
        while TK > 128 and _vmem_estimate(TQ, TK, Dp, D, in_bytes, mxu_bytes) > _VMEM_BUDGET:
            TK //= 2
    nq = Np // TQ
    nk = Np // TK

    # Zero padding is neutral for the L2-norm / sim / x_neg matmuls; padded
    # key columns are additionally masked out of the softmax in-kernel.
    if Dp != D or Np != N:
        x_p = jnp.pad(x, ((0, 0), (0, Np - N), (0, Dp - D)))
    else:
        x_p = x
    gamma2 = gamma.reshape(1, D)
    beta2 = beta.reshape(1, D)

    # Fixed-max softmax is exact when the bounded score range is well-formed.
    use_fixed_max = (2.0 / float(temp)) < 80.0

    kernel = functools.partial(
        _contranorm_kernel,
        scale=float(scale), inv_temp=1.0 / float(temp), eps=float(eps),
        d_orig=D, n_orig=N, d_padded=(Dp != D), n_padded=(Np != N),
        use_fixed_max=use_fixed_max,
    )

    k_index_map = lambda b, qi, ki: (b, ki, 0)
    k_spec = pl.BlockSpec((1, TK, Dp), k_index_map)
    if nk >= 3:
        try:
            # Triple-buffer the only per-step DMA to hide the restart bubble.
            k_spec = pl.BlockSpec((1, TK, Dp), k_index_map,
                                  pipeline_mode=pl.Buffered(3))
        except TypeError:
            pass  # older jax: fall back to default double buffering

    flops = int(4 * B * Np * Np * Dp + 12 * B * Np * Dp)
    transcendentals = int(B * Np * Np + 3 * B * Np)
    bytes_accessed = int(in_bytes * B * (Np * Dp * (1 + nq) + Np * D))

    out = pl.pallas_call(
        kernel,
        out_shape=jax.ShapeDtypeStruct((B, Np, D), x.dtype),
        grid_spec=pltpu.PrefetchScalarGridSpec(
            num_scalar_prefetch=0,
            grid=(B, nq, nk),
            in_specs=[
                pl.BlockSpec((1, TQ, Dp), lambda b, qi, ki: (b, qi, 0)),  # q-side x
                k_spec,                                                   # k/v-side x
                pl.BlockSpec((1, D), lambda b, qi, ki: (0, 0)),           # gamma
                pl.BlockSpec((1, D), lambda b, qi, ki: (0, 0)),           # beta
            ],
            out_specs=pl.BlockSpec((1, TQ, D), lambda b, qi, ki: (b, qi, 0)),
            scratch_shapes=[
                pltpu.VMEM((TQ, Dp), mxu_dtype),    # hoisted qn * (1/temp)
                pltpu.VMEM((TQ, 1), jnp.float32),   # running max (online path only)
                pltpu.VMEM((TQ, 1), jnp.float32),   # running denom l
                pltpu.VMEM((TQ, Dp), jnp.float32),  # unnormalized accumulator
            ],
        ),
        compiler_params=pltpu.CompilerParams(
            dimension_semantics=("parallel", "parallel", "arbitrary"),
            vmem_limit_bytes=_VMEM_LIMIT,
        ),
        cost_estimate=pl.CostEstimate(
            flops=flops, transcendentals=transcendentals,
            bytes_accessed=bytes_accessed),
    )(x_p, x_p, gamma2, beta2)

    return out[:, :N, :] if Np != N else out


def _contranorm_ref(x, gamma, beta, *, scale=0.1, temp=1.0, eps=1e-6):
    # Pure-JAX reference mirroring the PyTorch module (default config).
    norm = jnp.sqrt(jnp.sum(x * x, axis=-1, keepdims=True))
    xn = x / jnp.maximum(norm, 1e-12)
    sim = jnp.einsum("bnd,bmd->bnm", xn, xn) / temp
    p = jax.nn.softmax(sim, axis=-1)
    x_neg = jnp.einsum("bnm,bmd->bnd", p, x)
    y = x - scale * x_neg
    mu = jnp.mean(y, axis=-1, keepdims=True)
    var = jnp.mean((y - mu) ** 2, axis=-1, keepdims=True)
    yhat = (y - mu) * jax.lax.rsqrt(var + eps)
    return yhat * gamma.reshape(1, 1, -1) + beta.reshape(1, 1, -1)


if __name__ == "__main__":
    B, N, D = 2, 8, 32
    key = jax.random.PRNGKey(0)
    x = jax.random.normal(key, (B, N, D), dtype=jnp.float32)

    # Deterministic parameter init (matches nn.LayerNorm defaults).
    gamma = jnp.ones((D,), dtype=jnp.float32)
    beta = jnp.zeros((D,), dtype=jnp.float32)

    out = contranorm(x, gamma, beta, scale=0.1, temp=1.0, eps=1e-6)
    out = jax.block_until_ready(out)

    ref = _contranorm_ref(x, gamma, beta, scale=0.1, temp=1.0, eps=1e-6)
    assert out.shape == (B, N, D)
    assert jnp.allclose(out, ref, atol=2e-5, rtol=2e-5), "mismatch vs reference"

    print("KERNEL_OK")
</pallas_src>

<mosaic_0001>
module attributes {stable_mosaic.version = 11 : i64} {
  func.func @_contranorm_kernel(%arg0: i32, %arg1: i32, %arg2: i32, %arg3: memref<1x8x128xf32, #tpu.memory_space<vmem>>, %arg4: memref<1x8x128xf32, #tpu.memory_space<vmem>>, %arg5: memref<1x32xf32, #tpu.memory_space<vmem>>, %arg6: memref<1x32xf32, #tpu.memory_space<vmem>>, %arg7: memref<1x8x32xf32, #tpu.memory_space<vmem>>, %arg8: memref<8x128xf32, #tpu.memory_space<vmem>>, %arg9: memref<8x1xf32, #tpu.memory_space<vmem>>, %arg10: memref<8x1xf32, #tpu.memory_space<vmem>>, %arg11: memref<8x128xf32, #tpu.memory_space<vmem>>) attributes {dimension_semantics = [#tpu.dimension_semantics<parallel>, #tpu.dimension_semantics<parallel>, #tpu.dimension_semantics<arbitrary>], iteration_bounds = array<i64: 2, 1, 1>, scalar_prefetch = 0 : i64, scratch_operands = 4 : i64, tpu.core_type = #tpu.core_type<tc>, window_params = [{transform_indices = @transform_0, window_bounds = array<i64: 1, 8, 128>}, {transform_indices = @transform_1, window_bounds = array<i64: 1, 8, 128>}, {pipeline_mode = #tpu.pipeline_mode<synchronous>, transform_indices = @transform_2, window_bounds = array<i64: 1, 32>}, {pipeline_mode = #tpu.pipeline_mode<synchronous>, transform_indices = @transform_3, window_bounds = array<i64: 1, 32>}, {transform_indices = @transform_4, window_bounds = array<i64: 1, 8, 32>}]} {
    %c0_i32 = arith.constant 0 : i32
    %0 = arith.cmpi eq, %arg2, %c0_i32 : i32
    %1 = arith.extui %0 : i1 to i32
    %c0_i32_0 = arith.constant 0 : i32
    %2 = arith.cmpi ne, %1, %c0_i32_0 : i32
    scf.if %2 {
      %c0_23 = arith.constant 0 : index
      %c0_24 = arith.constant 0 : index
      %c0_25 = arith.constant 0 : index
      %32 = vector.load %arg3[%c0_23, %c0_24, %c0_25] : memref<1x8x128xf32, #tpu.memory_space<vmem>>, vector<1x8x128xf32>
      %33 = vector.shape_cast %32 : vector<1x8x128xf32> to vector<8x128xf32>
      %34 = arith.mulf %33, %33 : vector<8x128xf32>
      %cst_26 = arith.constant dense<0.000000e+00> : vector<8xf32>
      %35 = vector.multi_reduction <add>, %34, %cst_26 [1] : vector<8x128xf32> to vector<8xf32>
      %36 = vector.shape_cast %35 : vector<8xf32> to vector<8x1xf32>
      %cst_27 = arith.constant 1.000000e-24 : f32
      %37 = vector.broadcast %cst_27 : f32 to vector<8x1xf32>
      %38 = arith.maximumf %36, %37 : vector<8x1xf32>
      %39 = math.rsqrt %38 : vector<8x1xf32>
      %40 = vector.broadcast %39 : vector<8x1xf32> to vector<8x128xf32>
      %41 = arith.mulf %33, %40 : vector<8x128xf32>
      %cst_28 = arith.constant 1.000000e+00 : f32
      %42 = vector.broadcast %cst_28 : f32 to vector<8x128xf32>
      %43 = arith.mulf %41, %42 : vector<8x128xf32>
      %c0_29 = arith.constant 0 : index
      %c0_30 = arith.constant 0 : index
      %44 = vector.load %arg8[%c0_29, %c0_30] : memref<8x128xf32, #tpu.memory_space<vmem>>, vector<8x128xf32>
      tpu.vector_store %arg8[%c0_29, %c0_30], %43 {strides = array<i32>} : memref<8x128xf32, #tpu.memory_space<vmem>>, vector<8x128xf32>,
      %cst_31 = arith.constant 0.000000e+00 : f32
      %45 = vector.broadcast %cst_31 : f32 to vector<8x1xf32>
      %c0_32 = arith.constant 0 : index
      %c0_33 = arith.constant 0 : index
      %46 = vector.load %arg10[%c0_32, %c0_33] : memref<8x1xf32, #tpu.memory_space<vmem>>, vector<8x1xf32>
      tpu.vector_store %arg10[%c0_32, %c0_33], %45 {strides = array<i32>} : memref<8x1xf32, #tpu.memory_space<vmem>>, vector<8x1xf32>,
      %cst_34 = arith.constant 0.000000e+00 : f32
      %47 = vector.broadcast %cst_34 : f32 to vector<8x128xf32>
      %c0_35 = arith.constant 0 : index
      %c0_36 = arith.constant 0 : index
      %48 = vector.load %arg11[%c0_35, %c0_36] : memref<8x128xf32, #tpu.memory_space<vmem>>, vector<8x128xf32>
      tpu.vector_store %arg11[%c0_35, %c0_36], %47 {strides = array<i32>} : memref<8x128xf32, #tpu.memory_space<vmem>>, vector<8x128xf32>,
    } else {
    }
    %c0 = arith.constant 0 : index
    %c0_1 = arith.constant 0 : index
    %c0_2 = arith.constant 0 : index
    %3 = vector.load %arg4[%c0, %c0_1, %c0_2] : memref<1x8x128xf32, #tpu.memory_space<vmem>>, vector<1x8x128xf32>
    %4 = vector.shape_cast %3 : vector<1x8x128xf32> to vector<8x128xf32>
    %5 = arith.mulf %4, %4 : vector<8x128xf32>
    %cst = arith.constant dense<0.000000e+00> : vector<8xf32>
    %6 = vector.multi_reduction <add>, %5, %cst [1] : vector<8x128xf32> to vector<8xf32>
    %7 = vector.shape_cast %6 : vector<8xf32> to vector<8x1xf32>
    %cst_3 = arith.constant 1.000000e-24 : f32
    %8 = vector.broadcast %cst_3 : f32 to vector<8x1xf32>
    %9 = arith.maximumf %7, %8 : vector<8x1xf32>
    %10 = math.rsqrt %9 : vector<8x1xf32>
    %11 = vector.broadcast %10 : vector<8x1xf32> to vector<8x128xf32>
    %12 = arith.mulf %4, %11 : vector<8x128xf32>
    %c0_4 = arith.constant 0 : index
    %c0_5 = arith.constant 0 : index
    %13 = vector.load %arg8[%c0_4, %c0_5] : memref<8x128xf32, #tpu.memory_space<vmem>>, vector<8x128xf32>
    %cst_6 = arith.constant dense<0.000000e+00> : vector<8x8xf32>
    %14 = tpu.matmul %13, %12, %cst_6 {dimension_numbers = #tpu.dot_dimension_numbers<[1], [1], [0], [0], [0, 0, 1, 0], [], []>} : vector<8x128xf32>, vector<8x128xf32>, vector<8x8xf32> -> vector<8x8xf32>
    %c0_7 = arith.constant 0 : index
    %c0_8 = arith.constant 0 : index
    %c0_9 = arith.constant 0 : index
    %15 = vector.load %arg4[%c0_7, %c0_8, %c0_9] : memref<1x8x128xf32, #tpu.memory_space<vmem>>, vector<1x8x128xf32>
    %16 = vector.shape_cast %15 : vector<1x8x128xf32> to vector<8x128xf32>
    %cst_10 = arith.constant 1.000000e+00 : f32
    %17 = vector.broadcast %cst_10 : f32 to vector<8x8xf32>
    %18 = arith.subf %14, %17 : vector<8x8xf32>
    %19 = math.exp %18 : vector<8x8xf32>
    %c0_11 = arith.constant 0 : index
    %c0_12 = arith.constant 0 : index
    %20 = vector.load %arg10[%c0_11, %c0_12] : memref<8x1xf32, #tpu.memory_space<vmem>>, vector<8x1xf32>
    %cst_13 = arith.constant dense<0.000000e+00> : vector<8xf32>
    %21 = vector.multi_reduction <add>, %19, %cst_13 [1] : vector<8x8xf32> to vector<8xf32>
    %22 = vector.shape_cast %21 : vector<8xf32> to vector<8x1xf32>
    %23 = arith.addf %20, %22 : vector<8x1xf32>
    %c0_14 = arith.constant 0 : index
    %c0_15 = arith.constant 0 : index
    %24 = vector.load %arg10[%c0_14, %c0_15] : memref<8x1xf32, #tpu.memory_space<vmem>>, vector<8x1xf32>
    tpu.vector_store %arg10[%c0_14, %c0_15], %23 {strides = array<i32>} : memref<8x1xf32, #tpu.memory_space<vmem>>, vector<8x1xf32>,
    %c0_16 = arith.constant 0 : index
    %c0_17 = arith.constant 0 : index
    %25 = vector.load %arg11[%c0_16, %c0_17] : memref<8x128xf32, #tpu.memory_space<vmem>>, vector<8x128xf32>
    %cst_18 = arith.constant dense<0.000000e+00> : vector<8x128xf32>
    %26 = tpu.matmul %19, %16, %cst_18 {dimension_numbers = #tpu.dot_dimension_numbers<[1], [0], [0], [1], [0, 0, 1, 1], [], []>} : vector<8x8xf32>, vector<8x128xf32>, vector<8x128xf32> -> vector<8x128xf32>
    %27 = arith.addf %25, %26 : vector<8x128xf32>
    %c0_19 = arith.constant 0 : index
    %c0_20 = arith.constant 0 : index
    %28 = vector.load %arg11[%c0_19, %c0_20] : memref<8x128xf32, #tpu.memory_space<vmem>>, vector<8x128xf32>
    tpu.vector_store %arg11[%c0_19, %c0_20], %27 {strides = array<i32>} : memref<8x128xf32, #tpu.memory_space<vmem>>, vector<8x128xf32>,
    %c0_i32_21 = arith.constant 0 : i32
    %29 = arith.cmpi eq, %arg2, %c0_i32_21 : i32
    %30 = arith.extui %29 : i1 to i32
    %c0_i32_22 = arith.constant 0 : i32
    %31 = arith.cmpi ne, %30, %c0_i32_22 : i32
    scf.if %31 {
      %c0_23 = arith.constant 0 : index
      %c0_24 = arith.constant 0 : index
      %32 = vector.load %arg10[%c0_23, %c0_24] : memref<8x1xf32, #tpu.memory_space<vmem>>, vector<8x1xf32>
      %33 = tpu.reciprocal %32 : vector<8x1xf32> -> vector<8x1xf32>
      %c0_25 = arith.constant 0 : index
      %c0_26 = arith.constant 0 : index
      %34 = vector.load %arg11[%c0_25, %c0_26] : memref<8x128xf32, #tpu.memory_space<vmem>>, vector<8x128xf32>
      %35 = vector.broadcast %33 : vector<8x1xf32> to vector<8x128xf32>
      %36 = arith.mulf %34, %35 : vector<8x128xf32>
      %c0_27 = arith.constant 0 : index
      %c0_28 = arith.constant 0 : index
      %c0_29 = arith.constant 0 : index
      %37 = vector.load %arg3[%c0_27, %c0_28, %c0_29] : memref<1x8x128xf32, #tpu.memory_space<vmem>>, vector<1x8x128xf32>
      %38 = vector.shape_cast %37 : vector<1x8x128xf32> to vector<8x128xf32>
      %cst_30 = arith.constant 1.000000e-01 : f32
      %39 = vector.broadcast %cst_30 : f32 to vector<8x128xf32>
      %40 = arith.mulf %39, %36 : vector<8x128xf32>
      %41 = arith.subf %38, %40 : vector<8x128xf32>
      %cst_31 = arith.constant dense<0.000000e+00> : vector<8xf32>
      %42 = vector.multi_reduction <add>, %41, %cst_31 [1] : vector<8x128xf32> to vector<8xf32>
      %43 = vector.shape_cast %42 : vector<8xf32> to vector<8x1xf32>
      %cst_32 = arith.constant 3.125000e-02 : f32
      %44 = vector.broadcast %cst_32 : f32 to vector<8x1xf32>
      %45 = arith.mulf %43, %44 : vector<8x1xf32>
      %46 = tpu.iota {dimensions = array<i32: 1>} : vector<8x128xi32>
      %c32_i32 = arith.constant 32 : i32
      %47 = vector.broadcast %c32_i32 : i32 to vector<8x128xi32>
      %48 = arith.cmpi slt, %46, %47 : vector<8x128xi32>
      %49 = vector.broadcast %45 : vector<8x1xf32> to vector<8x128xf32>
      %50 = arith.subf %41, %49 : vector<8x128xf32>
      %cst_33 = arith.constant 0.000000e+00 : f32
      %51 = vector.broadcast %cst_33 : f32 to vector<8x128xf32>
      %52 = arith.select %48, %50, %51 : vector<8x128xi1>, vector<8x128xf32>
      %53 = arith.mulf %52, %52 : vector<8x128xf32>
      %cst_34 = arith.constant dense<0.000000e+00> : vector<8xf32>
      %54 = vector.multi_reduction <add>, %53, %cst_34 [1] : vector<8x128xf32> to vector<8xf32>
      %55 = vector.shape_cast %54 : vector<8xf32> to vector<8x1xf32>
      %cst_35 = arith.constant 3.125000e-02 : f32
      %56 = vector.broadcast %cst_35 : f32 to vector<8x1xf32>
      %57 = arith.mulf %55, %56 : vector<8x1xf32>
      %cst_36 = arith.constant 9.99999997E-7 : f32
      %58 = vector.broadcast %cst_36 : f32 to vector<8x1xf32>
      %59 = arith.addf %57, %58 : vector<8x1xf32>
      %60 = math.rsqrt %59 : vector<8x1xf32>
      %61 = vector.broadcast %60 : vector<8x1xf32> to vector<8x128xf32>
      %62 = arith.mulf %52, %61 : vector<8x128xf32>
      %63 = vector.extract_strided_slice %62 {offsets = [0, 0], sizes = [8, 32], strides = [1, 1]} : vector<8x128xf32> to vector<8x32xf32>
      %c0_37 = arith.constant 0 : index
      %c0_38 = arith.constant 0 : index
      %64 = vector.load %arg5[%c0_37, %c0_38] : memref<1x32xf32, #tpu.memory_space<vmem>>, vector<1x32xf32>
      %65 = vector.broadcast %64 : vector<1x32xf32> to vector<8x32xf32>
      %66 = arith.mulf %63, %65 : vector<8x32xf32>
      %c0_39 = arith.constant 0 : index
      %c0_40 = arith.constant 0 : index
      %67 = vector.load %arg6[%c0_39, %c0_40] : memref<1x32xf32, #tpu.memory_space<vmem>>, vector<1x32xf32>
      %68 = vector.broadcast %67 : vector<1x32xf32> to vector<8x32xf32>
      %69 = arith.addf %66, %68 : vector<8x32xf32>
      %c0_41 = arith.constant 0 : index
      %c0_42 = arith.constant 0 : index
      %c0_43 = arith.constant 0 : index
      %70 = vector.load %arg7[%c0_41, %c0_42, %c0_43] : memref<1x8x32xf32, #tpu.memory_space<vmem>>, vector<1x8x32xf32>
      %71 = vector.shape_cast %70 : vector<1x8x32xf32> to vector<8x32xf32>
      %72 = vector.shape_cast %69 : vector<8x32xf32> to vector<1x8x32xf32>
      tpu.vector_store %arg7[%c0_41, %c0_42, %c0_43], %72 {strides = array<i32>} : memref<1x8x32xf32, #tpu.memory_space<vmem>>, vector<1x8x32xf32>,
    } else {
    }
    return
  }
  func.func @transform_0(%arg0: i32, %arg1: i32, %arg2: i32) -> (i32, i32, i32) {
    %c0_i32 = arith.constant 0 : i32
    %c0_i32_0 = arith.constant 0 : i32
    return %arg0, %arg1, %c0_i32 : i32, i32, i32
  }
  func.func @transform_1(%arg0: i32, %arg1: i32, %arg2: i32) -> (i32, i32, i32) {
    %c0_i32 = arith.constant 0 : i32
    %c0_i32_0 = arith.constant 0 : i32
    return %arg0, %arg2, %c0_i32 : i32, i32, i32
  }
  func.func @transform_2(%arg0: i32, %arg1: i32, %arg2: i32) -> (i32, i32) {
    %c0_i32 = arith.constant 0 : i32
    %c0_i32_0 = arith.constant 0 : i32
    %c0_i32_1 = arith.constant 0 : i32
    return %c0_i32, %c0_i32_0 : i32, i32
  }
  func.func @transform_3(%arg0: i32, %arg1: i32, %arg2: i32) -> (i32, i32) {
    %c0_i32 = arith.constant 0 : i32
    %c0_i32_0 = arith.constant 0 : i32
    %c0_i32_1 = arith.constant 0 : i32
    return %c0_i32, %c0_i32_0 : i32, i32
  }
  func.func @transform_4(%arg0: i32, %arg1: i32, %arg2: i32) -> (i32, i32, i32) {
    %c0_i32 = arith.constant 0 : i32
    %c0_i32_0 = arith.constant 0 : i32
    return %arg0, %arg1, %c0_i32 : i32, i32, i32
  }
}

</mosaic_0001>

<llo_original>
// kernel: tpu_custom_call.1
$region0: #{tpu_custom_call.1}
  #allocation0 [shape = 'u32[]', space=smem, size = 0x4, offset = 0x4, fixed_abs, tag = 'smem constant byte address 0x4 - core index']
  #allocation1 [shape = 'u32[72,128]{1,0:T(1,128)}', space=vmem, size = 0x9000, scoped, tag = 'internal scratch']
  #allocation2 [shape = 'f32[8,128]{1,0:T(8,128)}', space=vmem, size = 0x1000, scoped, tag = 'scratch operand']
  #allocation3 [shape = 'f32[8,1]{1,0:T(8,128)}', space=vmem, size = 0x1000, scoped, tag = 'scratch operand']
  #allocation4 [shape = 'f32[8,1]{1,0:T(8,128)}', space=vmem, size = 0x1000, scoped, tag = 'scratch operand']
  #allocation5 [shape = 'f32[8,128]{1,0:T(8,128)}', space=vmem, size = 0x1000, scoped, tag = 'scratch operand']
  %s0 = inlined_call_operand.hbm [shape: f32[2,8,128], index: 0, kind: input, shape index: {}]
  %s1 = inlined_call_operand.hbm [shape: f32[2,8,128], index: 1, kind: input, shape index: {}]
  %s2 = inlined_call_operand.vmem [shape: f32[1,32], index: 2, kind: input, shape index: {}]
  %s3 = inlined_call_operand.vmem [shape: f32[1,32], index: 3, kind: input, shape index: {}]
  %s4 = inlined_call_operand.hbm [shape: f32[2,8,32], index: 4, kind: output, shape index: {}]
  %s5 = sld [smem:[#allocation0]]
  $region65: #{tpu_custom_call.1} parent=0
    _
  %s7 = ssub.s32 1, %s5
  %s8 = scalar_select 0, %s7, %s5
  $region1: #{tpu_custom_call.1} parent=0
    #allocation6 [shape = 'u8[8192]{0}', space=vmem, size = 0x2000, scoped, tag = 'input window, operand 0']
    #allocation7 [shape = 's32[2]{0}', space=sflag, size = 0x8, scoped, tag = 'scoped memory for tpu_custom_call.1']
    #allocation8 [shape = 's32[2]{0}', space=sflag, size = 0x8, scoped, tag = 'scoped memory for tpu_custom_call.1']
    #allocation9 [shape = 'u8[8192]{0}', space=vmem, size = 0x2000, scoped, tag = 'input window, operand 1']
    #allocation10 [shape = 's32[2]{0}', space=sflag, size = 0x8, scoped, tag = 'scoped memory for tpu_custom_call.1']
    #allocation11 [shape = 'u8[8192]{0}', space=vmem, size = 0x2000, scoped, tag = 'output window, operand 0']
    %9 = vsyncpa [#allocation7], 0
    %s10 = scalar_lea.sflag [#allocation7], 1
    %11 = vsyncpa %s10, 0
    %12 = vsyncpa [#allocation10], 0
    %s13 = scalar_lea.sflag [#allocation10], 1
    %14 = vsyncpa %s13, 0
    %15 = vsyncpa [#allocation8], 0
    %s16 = scalar_lea.sflag [#allocation8], 1
    %17 = vsyncpa %s16, 0
    loop: start=0, step=1, limit=4
    $region2: #{tpu_custom_call.1} parent=1 // loop_pre_header
      _
    $region3: #{tpu_custom_call.1} parent=1 // loop_header
      %s19 = sphi 0, %s23
      %p20 = scmp.ge.s32.totalorder %s19, 4
      %s26 = sphi 0, %s45
      %s27 = sphi 0, %s41
      %s28 = sphi 0, %s37
      %s29 = sphi 0, %s26
      %s30 = sphi 0, %s27
      %s31 = sphi 0, %s28
      %s32 = sphi 0, %s29
      %s33 = sphi 0, %s30
      %s34 = sphi 0, %s31
      %s50 = sphi 0, %s52
      %s53 = sphi 0, %s50
      %s54 = sphi 0, %s53
      %s70 = sphi 0, %s54
      %s78 = sphi 0, %s80
      %s81 = sphi 0, %s78
      %s82 = sphi 0, %s81
      %s98 = sphi 0, %s82
      %s102 = sphi 0, %s102
      %s104 = sphi 0, %s102
      %s105 = sphi 0, %s104
      %s119 = sphi 0, %s105
      %s123 = sphi 0, %s123
      %s125 = sphi 0, %s123
      %s126 = sphi 0, %s125
      %s140 = sphi 0, %s126
      %s148 = sphi 0, %s150
      %s151 = sphi 0, %s148
      %s152 = sphi 0, %s151
      %s168 = sphi 0, %s152
    $region4: #{tpu_custom_call.1} parent=1 // loop_header_branch
      %22 = sbr.rel (%p20) target = $region8
    $region5: #{tpu_custom_call.1} parent=1 // loop_body
      %s24 = ssub.s32 %s19, 1
      %s25 = ssub.s32 %s19, 2
      %s35 = sadd.s32 1, %s28
      %p36 = scmp.ge.s32.totalorder %s35, 1
      %s37 = scalar_select %p36, 0, %s35
      %s38 = sadd.s32 1, %s27
      %s39 = scalar_select %p36, %s38, %s27
      %p40 = scmp.ge.s32.totalorder %s39, 1
      %s41 = scalar_select %p40, 0, %s39
      %s42 = sadd.s32 1, %s26
      %s43 = scalar_select %p40, %s42, %s26
      %p44 = scmp.ge.s32.totalorder %s43, 2
      %s45 = scalar_select %p44, 0, %s43
      %s46 = ssub.s32 %s26, %s45
      %s47 = ssub.s32 %s27, %s41
      %s48 = sor.u32 %s46, %s47
      %p49 = scmp.eq.s32.totalorder %s48, 0
      %s51 = sadd.s32 %s50, 1
      %s52 = scalar_select %p49, %s50, %s51
      %p55 = pneg %p49
      %p56 = scmp.eq.s32.totalorder %s19, 1
      %p57 = por %p55, %p56
      %p58 = scmp.ne.s32.totalorder %s50, %s53
      %p59 = scmp.eq.s32.totalorder %s19, 0
      %p60 = por %p58, %p59
      %p61 = scmp.ne.s32.totalorder %s50, %s53
      %p62 = scmp.eq.s32.totalorder %s24, 1
      %p63 = por %p61, %p62
      %p64 = scmp.ne.s32.totalorder %s53, %s54
      %p65 = scmp.eq.s32.totalorder %s24, 0
      %p66 = por %p64, %p65
      %p67 = scmp.ne.s32.totalorder %s53, %s54
      %p68 = scmp.eq.s32.totalorder %s25, 1
      %p69 = por %p67, %p68
      %p71 = scmp.ne.s32.totalorder %s54, %s70
      %p72 = scmp.eq.s32.totalorder %s25, 0
      %p73 = por %p71, %p72
      %s74 = ssub.s32 %s26, %s45
      %s75 = ssub.s32 %s28, %s37
      %s76 = sor.u32 %s74, %s75
      %p77 = scmp.eq.s32.totalorder %s76, 0
      %s79 = sadd.s32 %s78, 1
      %s80 = scalar_select %p77, %s78, %s79
      %p83 = pneg %p77
      %p84 = scmp.eq.s32.totalorder %s19, 1
      %p85 = por %p83, %p84
      %p86 = scmp.ne.s32.totalorder %s78, %s81
      %p87 = scmp.eq.s32.totalorder %s19, 0
      %p88 = por %p86, %p87
      %p89 = scmp.ne.s32.totalorder %s78, %s81
      %p90 = scmp.eq.s32.totalorder %s24, 1
      %p91 = por %p89, %p90
      %p92 = scmp.ne.s32.totalorder %s81, %s82
      %p93 = scmp.eq.s32.totalorder %s24, 0
      %p94 = por %p92, %p93
      %p95 = scmp.ne.s32.totalorder %s81, %s82
      %p96 = scmp.eq.s32.totalorder %s25, 1
      %p97 = por %p95, %p96
      %p99 = scmp.ne.s32.totalorder %s82, %s98
      %p100 = scmp.eq.s32.totalorder %s25, 0
      %p101 = por %p99, %p100
      %s103 = sadd.s32 %s102, 1
      %p106 = scmp.eq.s32.totalorder %s19, 1
      %p107 = scmp.ne.s32.totalorder %s102, %s104
      %p108 = scmp.eq.s32.totalorder %s19, 0
      %p109 = por %p107, %p108
      %p110 = scmp.ne.s32.totalorder %s102, %s104
      %p111 = scmp.eq.s32.totalorder %s24, 1
      %p112 = por %p110, %p111
      %p113 = scmp.ne.s32.totalorder %s104, %s105
      %p114 = scmp.eq.s32.totalorder %s24, 0
      %p115 = por %p113, %p114
      %p116 = scmp.ne.s32.totalorder %s104, %s105
      %p117 = scmp.eq.s32.totalorder %s25, 1
      %p118 = por %p116, %p117
      %p120 = scmp.ne.s32.totalorder %s105, %s119
      %p121 = scmp.eq.s32.totalorder %s25, 0
      %p122 = por %p120, %p121
      %s124 = sadd.s32 %s123, 1
      %p127 = scmp.eq.s32.totalorder %s19, 1
      %p128 = scmp.ne.s32.totalorder %s123, %s125
      %p129 = scmp.eq.s32.totalorder %s19, 0
      %p130 = por %p128, %p129
      %p131 = scmp.ne.s32.totalorder %s123, %s125
      %p132 = scmp.eq.s32.totalorder %s24, 1
      %p133 = por %p131, %p132
      %p134 = scmp.ne.s32.totalorder %s125, %s126
      %p135 = scmp.eq.s32.totalorder %s24, 0
      %p136 = por %p134, %p135
      %p137 = scmp.ne.s32.totalorder %s125, %s126
      %p138 = scmp.eq.s32.totalorder %s25, 1
      %p139 = por %p137, %p138
      %p141 = scmp.ne.s32.totalorder %s126, %s140
      %p142 = scmp.eq.s32.totalorder %s25, 0
      %p143 = por %p141, %p142
      %s144 = ssub.s32 %s26, %s45
      %s145 = ssub.s32 %s27, %s41
      %s146 = sor.u32 %s144, %s145
      %p147 = scmp.eq.s32.totalorder %s146, 0
      %s149 = sadd.s32 %s148, 1
      %s150 = scalar_select %p147, %s148, %s149
      %p153 = pneg %p147
      %p154 = scmp.eq.s32.totalorder %s19, 1
      %p155 = por %p153, %p154
      %p156 = scmp.ne.s32.totalorder %s148, %s151
      %p157 = scmp.eq.s32.totalorder %s19, 0
      %p158 = por %p156, %p157
      %p159 = scmp.ne.s32.totalorder %s148, %s151
      %p160 = scmp.eq.s32.totalorder %s24, 1
      %p161 = por %p159, %p160
      %p162 = scmp.ne.s32.totalorder %s151, %s152
      %p163 = scmp.eq.s32.totalorder %s24, 0
      %p164 = por %p162, %p163
      %p165 = scmp.ne.s32.totalorder %s151, %s152
      %p166 = scmp.eq.s32.totalorder %s25, 1
      %p167 = por %p165, %p166
      %p169 = scmp.ne.s32.totalorder %s152, %s168
      %p170 = scmp.eq.s32.totalorder %s25, 0
      %p171 = por %p169, %p170
      %p172 = scmp.le.s32.totalorder 1, %s19
      %p173 = scmp.lt.s32.totalorder %s19, 3
      %p174 = pnand %p172, %p173
      %p175 = pneg %p174
      // Predicated region
      $region9: #{tpu_custom_call.1} parent=5 // pred_check
        _
      $region10: #{tpu_custom_call.1} parent=5 // pred_check_branch
        %177 = sbr.rel (%p174) target = $region12
      $region11: #{tpu_custom_call.1} parent=5 // pred_region
        %s178 = ssub.s32 %s19, 1
        // Predicated region
        $region13: #{tpu_custom_call.1} parent=11 // pred_check
          %p179 = pneg %p115
        $region14: #{tpu_custom_call.1} parent=11 // pred_check_branch
          %181 = sbr.rel (%p179) target = $region16
        $region15: #{tpu_custom_call.1} parent=11 // pred_region
          _
        $region16: #{tpu_custom_call.1} parent=11 // pred_fallthru
          _
        // Predicated region
        $region17: #{tpu_custom_call.1} parent=11 // pred_check
          %p182 = pneg %p136
        $region18: #{tpu_custom_call.1} parent=11 // pred_check_branch
          %184 = sbr.rel (%p182) target = $region20
        $region19: #{tpu_custom_call.1} parent=11 // pred_region
          _
        $region20: #{tpu_custom_call.1} parent=11 // pred_fallthru
          _
      $region12: #{tpu_custom_call.1} parent=5 // pred_fallthru
        _
      %p185 = scmp.lt.s32.totalorder %s19, 2
      // Predicated region
      $region21: #{tpu_custom_call.1} parent=5 // pred_check
        %p186 = pneg %p185
      $region22: #{tpu_custom_call.1} parent=5 // pred_check_branch
        %188 = sbr.rel (%p186) target = $region24
      $region23: #{tpu_custom_call.1} parent=5 // pred_region
        // Predicated region
        $region25: #{tpu_custom_call.1} parent=23 // pred_check
          %p189 = pneg %p60
        $region26: #{tpu_custom_call.1} parent=23 // pred_check_branch
          %191 = sbr.rel (%p189) target = $region28
        $region27: #{tpu_custom_call.1} parent=23 // pred_region
          %s192 = sand.u32 %s50, 1
          %s193 = scalar_lea.sflag [#allocation7], %s192
          %s194 = sand.u32 %s50, 1
          %s195 = smul.addr %s194, 8
          %s196 = scalar_lea.vmem [#allocation6], %s195
          %198 = vsyncadd %s193, 0
          %s199 = sadd.s32 %s27, %s26
          %s200 = smul.addr %s199, 8
          %s201 = scalar_lea.hbm %s0, %s200
          %s203 = sshll.u32 %s201, 4
          %s204 = int_to_ptr.hbm [resolvable:$true] %s203
          %s205 = sshll.u32 %s196, 4
          %s206 = int_to_ptr.vmem [resolvable:$true] %s205
          %208 = dma.hbm_to_vmem [thread:$0]  %s204, 128, %s206, %s193
        $region28: #{tpu_custom_call.1} parent=23 // pred_fallthru
          _
        // Predicated region
        $region29: #{tpu_custom_call.1} parent=23 // pred_check
          %p209 = pneg %p88
        $region30: #{tpu_custom_call.1} parent=23 // pred_check_branch
          %211 = sbr.rel (%p209) target = $region32
        $region31: #{tpu_custom_call.1} parent=23 // pred_region
          %s212 = sand.u32 %s78, 1
          %s213 = scalar_lea.sflag [#allocation10], %s212
          %s214 = sand.u32 %s78, 1
          %s215 = smul.addr %s214, 8
          %s216 = scalar_lea.vmem [#allocation9], %s215
          %218 = vsyncadd %s213, 0
          %s219 = sadd.s32 %s28, %s26
          %s220 = smul.addr %s219, 8
          %s221 = scalar_lea.hbm %s1, %s220
          %s223 = sshll.u32 %s221, 4
          %s224 = int_to_ptr.hbm [resolvable:$true] %s223
          %s225 = sshll.u32 %s216, 4
          %s226 = int_to_ptr.vmem [resolvable:$true] %s225
          %228 = dma.hbm_to_vmem [thread:$0]  %s224, 128, %s226, %s213
        $region32: #{tpu_custom_call.1} parent=23 // pred_fallthru
          _
      $region24: #{tpu_custom_call.1} parent=5 // pred_fallthru
        _
      %p229 = scmp.le.s32.totalorder 1, %s19
      %p230 = scmp.lt.s32.totalorder %s19, 3
      %p231 = pnand %p229, %p230
      %p232 = pneg %p231
      // Predicated region
      $region33: #{tpu_custom_call.1} parent=5 // pred_check
        _
      $region34: #{tpu_custom_call.1} parent=5 // pred_check_branch
        %234 = sbr.rel (%p231) target = $region36
      $region35: #{tpu_custom_call.1} parent=5 // pred_region
        %s235 = ssub.s32 %s19, 1
        %s236 = sand.u32 %s53, 1
        %s237 = scalar_lea.sflag [#allocation7], %s236
        %s238 = sand.u32 %s53, 1
        %s239 = smul.addr %s238, 8
        %s240 = scalar_lea.vmem [#allocation6], %s239
        // Predicated region
        $region37: #{tpu_custom_call.1} parent=35 // pred_check
          %p241 = pneg %p66
        $region38: #{tpu_custom_call.1} parent=35 // pred_check_branch
          %243 = sbr.rel (%p241) target = $region40
        $region39: #{tpu_custom_call.1} parent=35 // pred_region
          %245 = dma.done %s237, 128
        $region40: #{tpu_custom_call.1} parent=35 // pred_fallthru
          _
        %s246 = sand.u32 %s81, 1
        %s247 = scalar_lea.sflag [#allocation10], %s246
        %s248 = sand.u32 %s81, 1
        %s249 = smul.addr %s248, 8
        %s250 = scalar_lea.vmem [#allocation9], %s249
        // Predicated region
        $region41: #{tpu_custom_call.1} parent=35 // pred_check
          %p251 = pneg %p94
        $region42: #{tpu_custom_call.1} parent=35 // pred_check_branch
          %253 = sbr.rel (%p251) target = $region44
        $region43: #{tpu_custom_call.1} parent=35 // pred_region
          %255 = dma.done %s247, 128
        $region44: #{tpu_custom_call.1} parent=35 // pred_fallthru
          _
        %s256 = sand.u32 %s53, 1
        %s257 = scalar_lea.sflag [#allocation7], %s256
        %s258 = sand.u32 %s53, 1
        %s259 = smul.addr %s258, 8
        %s260 = scalar_lea.vmem [#allocation6], %s259
        %p261 = pneg %p66
        %p262 = pneg %p63
        %s263 = sand.u32 %s81, 1
        %s264 = scalar_lea.sflag [#allocation10], %s263
        %s265 = sand.u32 %s81, 1
        %s266 = smul.addr %s265, 8
        %s267 = scalar_lea.vmem [#allocation9], %s266
        %p268 = pneg %p94
        %p269 = pneg %p91
        %p270 = pneg %p115
        %p271 = pneg %p112
        %p272 = pneg %p136
        %p273 = pneg %p133
        %p274 = pneg %p164
        %p275 = pneg %p161
        %s276 = sand.u32 %s151, 1
        %s277 = scalar_lea.sflag [#allocation8], %s276
        %s278 = sand.u32 %s151, 1
        %s279 = smul.addr %s278, 8
        %s280 = scalar_lea.vmem [#allocation11], %s279
        %p281 = scmp.eq.s32.totalorder %s31, 0
        // Predicated region
        $region45: #{tpu_custom_call.1} parent=35 // pred_check
          %p282 = pneg %p281
        $region46: #{tpu_custom_call.1} parent=35 // pred_check_branch
          %284 = sbr.rel (%p282) target = $region48
        $region47: #{tpu_custom_call.1} parent=35 // pred_region
          %v285 = vld [vmem:[%s240] sm:$0xff]
          %v286 = vmul.f32 %v285, %v285
          %287 = vadd.xlane.f32.xlu0 %v286
          %v288 = vpop.xlane.xlu0 %287
          %v289 = vmax.f32 %v288, 1e-24
          %v290 = vrsqrt.pop %v289
          %v291 = vmul.f32 %v290, %v289
          %v292 = vmul.f32 %v291, %v290
          %v293 = vmul.f32 0.5, %v292
          %v294 = vsub.f32 1.5, %v293
          %v295 = vmul.f32 %v290, %v294
          %vm296 = vweird.f32 %v289
          %vm297 = vweird.f32 %v290
          %vm298 = vmor %vm296, %vm297
          %v299 = vsel %vm298, %v290, %v295
          %v300 = vmul.f32 %v285, %v299
          %301 = vst [vmem:[#allocation2] sm:$0xff] %v300
          %vm302 = vcmask 7168
          %303 = vst.msk [vmem:[#allocation4] sm:$0xff] %vm302, 0.0
          %304 = vst [vmem:[#allocation5] sm:$0xff] 0.0
        $region48: #{tpu_custom_call.1} parent=35 // pred_fallthru
          _
        %v305 = vld [vmem:[%s250] sm:$0xff]
        %v306 = vmul.f32 %v305, %v305
        %307 = vadd.xlane.f32.xlu0 %v306
        %v308 = vpop.xlane.xlu0 %307
        %v309 = vmax.f32 %v308, 1e-24
        %v310 = vrsqrt.pop %v309
        %v311 = vmul.f32 %v310, %v309
        %v312 = vmul.f32 %v311, %v310
        %v313 = vmul.f32 0.5, %v312
        %v314 = vsub.f32 1.5, %v313
        %v315 = vmul.f32 %v310, %v314
        %vm316 = vweird.f32 %v309
        %vm317 = vweird.f32 %v310
        %vm318 = vmor %vm316, %vm317
        %v319 = vsel %vm318, %v310, %v315
        %v320 = vmul.f32 %v305, %v319
        %v321 = vld [vmem:[#allocation2] sm:$0xff]
        %322 = vmatpush.xpose.msra.mxu0 0.0
        %323 = vmatpush.xpose.msra.mxu0 0.0
        %324 = vmatpush.xpose.msra.mxu0 0.0
        %325 = vmatpush.xpose.msra.mxu0 0.0
        %326 = vmatpush.xpose.msra.mxu0 0.0
        %327 = vmatpush.xpose.msra.mxu0 0.0
        %328 = vmatpush.xpose.msra.mxu0 0.0
        %329 = vmatpush.xpose.msra.mxu0 0.0
        %330 = vmatpush.xpose.msra.mxu0 0.0
        %331 = vmatpush.xpose.msra.mxu0 0.0
        %332 = vmatpush.xpose.msra.mxu0 0.0
        %333 = vmatpush.xpose.msra.mxu0 0.0
        %334 = vmatpush.xpose.msra.mxu0 0.0
        %335 = vmatpush.xpose.msra.mxu0 0.0
        %336 = vmatpush.xpose.msra.mxu0 0.0
        %337 = vmatpush.xpose.msra.mxu0 %v320
        %338 = vmatmul.f32.gmra.mxu0 %v321
        %v339 = vpop.f32.mrf.mxu0
        %v340 = vadd.f32 0.0, %v339
        %341 = vdwg.mxu0
        %v342 = vsub.f32 %v340, 1.0
        %v343 = vmul.f32 %v342, 1.442695
        %v344 = vpow.pop %v343
        %v345 = vld [vmem:[#allocation4] sm:$0xff]
        %vm346 = vcmask 64512
        %v347 = vsel %vm346, %v344, 0.0
        %348 = vadd.xlane.f32.xlu0 %v347
        %v349 = vpop.xlane.xlu0 %348
        %v350 = vadd.f32 %v345, %v349
        %vm351 = vcmask 7168
        %352 = vst.msk [vmem:[#allocation4] sm:$0xff] %vm351, %v350
        %v353 = vld [vmem:[#allocation5] sm:$0xff]
        %v355 = vsel %vm346, %v344, 0
        %357 = vmatpush.msra.mxu0 0.0
        %358 = vmatpush.msra.mxu0 0.0
        %359 = vmatpush.msra.mxu0 0.0
        %360 = vmatpush.msra.mxu0 0.0
        %361 = vmatpush.msra.mxu0 0.0
        %362 = vmatpush.msra.mxu0 0.0
        %363 = vmatpush.msra.mxu0 0.0
        %364 = vmatpush.msra.mxu0 0.0
        %365 = vmatpush.msra.mxu0 0.0
        %366 = vmatpush.msra.mxu0 0.0
        %367 = vmatpush.msra.mxu0 0.0
        %368 = vmatpush.msra.mxu0 0.0
        %369 = vmatpush.msra.mxu0 0.0
        %370 = vmatpush.msra.mxu0 0.0
        %371 = vmatpush.msra.mxu0 0.0
        %372 = vmatpush.msra.mxu0 %v305
        %373 = vmatmul.f32.gmra.mxu0 %v355
        %v374 = vpop.f32.mrf.mxu0
        %v375 = vadd.f32 0.0, %v374
        %376 = vdwg.mxu0
        %v377 = vadd.f32 %v353, %v375
        %378 = vst [vmem:[#allocation5] sm:$0xff] %v377
        // Predicated region
        $region49: #{tpu_custom_call.1} parent=35 // pred_check
          %p379 = pneg %p281
        $region50: #{tpu_custom_call.1} parent=35 // pred_check_branch
          %381 = sbr.rel (%p379) target = $region52
        $region51: #{tpu_custom_call.1} parent=35 // pred_region
          %v382 = vld [vmem:[#allocation4] sm:$0xff]
          %v383 = vrcp.pop %v382
          %v384 = vmul.f32 %v382, %v383
          %v385 = vsub.f32 1.0, %v384
          %v386 = vmul.f32 %v383, %v385
          %v387 = vadd.f32 %v383, %v386
          %vm388 = vweird.f32 %v382
          %vm389 = vweird.f32 %v383
          %vm390 = vmor %vm388, %vm389
          %v391 = vsel %vm390, %v383, %v387
          %v392 = vand.u32 2147483647, %v382
          %vm393 = vcmp.eq.f32.partialorder %v392, 8.507059e+37
          %v394 = vand.u32 %v382, 2147483648
          %v395 = vor.u32 1.1754944e-38, %v394
          %v396 = vsel %vm393, %v395, %v391
          %v397 = vld [vmem:[#allocation5] sm:$0xff]
          %399 = vset.pattern.permute.xlu0 0
          %400 = vperm.xlu0 %399, %v396
          %v401 = vpop.permute.xlu0 %400
          %v403 = vmul.f32 %v397, %v401
          %v404 = vld [vmem:[%s240] sm:$0xff]
          %v405 = vmul.f32 %v403, 0.1
          %v406 = vsub.f32 %v404, %v405
          %407 = vadd.xlane.f32.xlu0 %v406
          %v408 = vpop.xlane.xlu0 %407
          %v409 = vmul.f32 %v408, 0.03125
          %v410 = vlaneseq
          %v411 = vand.u32 %v410, 127
          %vm412 = vcmp.lt.s32.totalorder %v411, 32
          %v413 = vsub.f32 %v406, %v409
          %v414 = vsel %vm412, %v413, 0.0
          %v415 = vmul.f32 %v414, %v414
          %416 = vadd.xlane.f32.xlu0 %v415
          %v417 = vpop.xlane.xlu0 %416
          %v418 = vmul.f32 %v417, 0.03125
          %v419 = vadd.f32 %v418, 1e-06
          %v420 = vrsqrt.pop %v419
          %v421 = vmul.f32 %v420, %v419
          %v422 = vmul.f32 %v421, %v420
          %v423 = vmul.f32 0.5, %v422
          %v424 = vsub.f32 1.5, %v423
          %v425 = vmul.f32 %v420, %v424
          %vm426 = vweird.f32 %v419
          %vm427 = vweird.f32 %v420
          %vm428 = vmor %vm426, %vm427
          %v429 = vsel %vm428, %v420, %v425
          %v430 = vmul.f32 %v414, %v429
          %v431 = vld [vmem:[%s2] sm:$0x1]
          %v433 = vperm.slane %v431, 0
          %v435 = vmul.f32 %v430, %v433
          %v436 = vld [vmem:[%s3] sm:$0x1]
          %v438 = vperm.slane %v436, 0
          %v440 = vadd.f32 %v435, %v438
          %vm441 = vcmask 261120
          %442 = vst.msk [vmem:[%s280] sm:$0xff] %vm441, %v440
        $region52: #{tpu_custom_call.1} parent=35 // pred_fallthru
          _
        %s443 = sand.u32 %s151, 1
        %s444 = scalar_lea.sflag [#allocation8], %s443
        %s445 = sand.u32 %s151, 1
        %s446 = smul.addr %s445, 8
        %s447 = scalar_lea.vmem [#allocation11], %s446
        // Predicated region
        $region53: #{tpu_custom_call.1} parent=35 // pred_check
          %p448 = pneg %p161
        $region54: #{tpu_custom_call.1} parent=35 // pred_check_branch
          %450 = sbr.rel (%p448) target = $region56
        $region55: #{tpu_custom_call.1} parent=35 // pred_region
          %452 = vsyncadd %s444, 0
          %s453 = sadd.s32 %s30, %s29
          %s454 = smul.addr %s453, 8
          %s455 = scalar_lea.hbm %s4, %s454
          %s457 = sshll.u32 %s447, 4
          %s458 = int_to_ptr.vmem [resolvable:$true] %s457
          %s459 = sshll.u32 %s455, 4
          %s460 = int_to_ptr.hbm [resolvable:$true] %s459
          %462 = dma.vmem_to_hbm [thread:$0]  %s458, 128, %s460, %s444
        $region56: #{tpu_custom_call.1} parent=35 // pred_fallthru
          _
      $region36: #{tpu_custom_call.1} parent=5 // pred_fallthru
        _
      %p463 = scmp.le.s32.totalorder 2, %s19
      // Predicated region
      $region57: #{tpu_custom_call.1} parent=5 // pred_check
        %p464 = pneg %p463
      $region58: #{tpu_custom_call.1} parent=5 // pred_check_branch
        %466 = sbr.rel (%p464) target = $region60
      $region59: #{tpu_custom_call.1} parent=5 // pred_region
        %s467 = ssub.s32 %s19, 2
        // Predicated region
        $region61: #{tpu_custom_call.1} parent=59 // pred_check
          %p468 = pneg %p167
        $region62: #{tpu_custom_call.1} parent=59 // pred_check_branch
          %470 = sbr.rel (%p468) target = $region64
        $region63: #{tpu_custom_call.1} parent=59 // pred_region
          %s471 = sand.u32 %s152, 1
          %s472 = scalar_lea.sflag [#allocation8], %s471
          %s473 = sand.u32 %s152, 1
          %s474 = smul.addr %s473, 8
          %s475 = scalar_lea.vmem [#allocation11], %s474
          %477 = dma.done %s472, 128
        $region64: #{tpu_custom_call.1} parent=59 // pred_fallthru
          _
      $region60: #{tpu_custom_call.1} parent=5 // pred_fallthru
        _
    $region6: #{tpu_custom_call.1} parent=1 // loop_footer
      %s23 = sadd.s32 1, %s19
    $region7: #{tpu_custom_call.1} parent=1 // loop_footer_branch
      %18 = sbr.rel target = $region3
    $region8: #{tpu_custom_call.1} parent=1 // loop_exit
      _
    %478 = vsyncpa [#allocation7], 1
    %s479 = scalar_lea.sflag [#allocation7], 1
    %480 = vsyncpa %s479, 1
    %481 = vsyncpa [#allocation10], 1
    %s482 = scalar_lea.sflag [#allocation10], 1
    %483 = vsyncpa %s482, 1
    %484 = vsyncpa [#allocation8], 1
    %s485 = scalar_lea.sflag [#allocation8], 1
    %486 = vsyncpa %s485, 1

</llo_original>
